<compile_context>
chip_gen: v7x
topology: tpu7x:2x2x1
jax: 0.10.0
libtpu: 0.0.40
codegen_flags: <defaults>
</compile_context>

<pallas_src>
import functools

import jax
import jax.numpy as jnp
from jax.experimental import pallas as pl
from jax.experimental.pallas import tpu as pltpu

BETA_SHIFT = 1.0
NORM_EPS = 1e-6
LN_EPS = 1e-5

LANE = 128
SUBLANE = 8


def _round_up(x, m):
    return (x + m - 1) // m * m


def _mag_kernel(txt_ref, vid_ref, aud_ref,
                wt_ref, wv_ref, wa_ref, vec_ref,
                o_ref, *, d_text, d_text_pad):
    # Token tile of each modality; video/audio arrive in their storage dtype
    # and are cast to f32 here (MIA.forward's .float()).
    t = txt_ref[...].astype(jnp.float32)
    v = vid_ref[...].astype(jnp.float32)
    a = aud_ref[...].astype(jnp.float32)

    # Fused matmuls: one MXU matmul per modality against a 2*Dt-wide slab.
    #   text slab  columns: [gate_v text part | gate_a text part]
    #   video slab columns: [gate_v video part | W_v projection ]
    #   audio slab columns: [gate_a audio part | W_a projection ]
    t_proj = jnp.dot(t, wt_ref[...], preferred_element_type=jnp.float32)
    v_proj = jnp.dot(v, wv_ref[...], preferred_element_type=jnp.float32)
    a_proj = jnp.dot(a, wa_ref[...], preferred_element_type=jnp.float32)

    b_hv = vec_ref[0:1, :]
    b_ha = vec_ref[1:2, :]
    b_v = vec_ref[2:3, :]
    b_a = vec_ref[3:4, :]
    gamma = vec_ref[4:5, :]
    beta = vec_ref[5:6, :]

    dp = d_text_pad  # static, multiple of 128 -> lane-aligned slices
    gate_v = jax.nn.relu(t_proj[:, :dp] + v_proj[:, :dp] + b_hv)
    gate_a = jax.nn.relu(t_proj[:, dp:] + a_proj[:, :dp] + b_ha)
    h_v = v_proj[:, dp:] + b_v
    h_a = a_proj[:, dp:] + b_a
    h_m = gate_v * h_v + gate_a * h_a

    # Adaptation-gate scaling: alpha = min(||t|| / (||h_m|| + eps) * beta, 1).
    # Padded lanes of t and h_m are exactly zero, so the sums need no mask.
    em_norm = jnp.sqrt(jnp.sum(t * t, axis=-1, keepdims=True))
    hm_norm = jnp.sqrt(jnp.sum(h_m * h_m, axis=-1, keepdims=True)) + NORM_EPS
    alpha = jnp.minimum(
        em_norm * pl.reciprocal(hm_norm, approx=False) * BETA_SHIFT, 1.0)

    emb = t + alpha * h_m

    # LayerNorm over the *true* feature dim.  Padded lanes of emb are zero, so
    # E[x] and E[x^2] computed with a 1/d_text scale are exact without a mask.
    inv_d = jnp.float32(1.0 / d_text)
    mean = jnp.sum(emb, axis=-1, keepdims=True) * inv_d
    var = jnp.sum(emb * emb, axis=-1, keepdims=True) * inv_d - mean * mean
    out = (emb - mean) * jax.lax.rsqrt(var + LN_EPS)
    out = out * gamma + beta   # gamma/beta are zero in padded lanes

    o_ref[...] = out.astype(o_ref.dtype)


def pack_params(params, d_text, d_video, d_audio):
    """Pack weights into lane-padded fused slabs (done once, outside the hot path)."""
    dtp = _round_up(d_text, LANE)
    dvp = _round_up(d_video, LANE)
    dap = _round_up(d_audio, LANE)

    wt = jnp.zeros((dtp, 2 * dtp), jnp.float32)
    wt = wt.at[:d_text, :d_text].set(params["W_hv_t"])
    wt = wt.at[:d_text, dtp:dtp + d_text].set(params["W_ha_t"])

    wv = jnp.zeros((dvp, 2 * dtp), jnp.float32)
    wv = wv.at[:d_video, :d_text].set(params["W_hv_v"])
    wv = wv.at[:d_video, dtp:dtp + d_text].set(params["W_v"])

    wa = jnp.zeros((dap, 2 * dtp), jnp.float32)
    wa = wa.at[:d_audio, :d_text].set(params["W_ha_a"])
    wa = wa.at[:d_audio, dtp:dtp + d_text].set(params["W_a"])

    vec = jnp.zeros((8, dtp), jnp.float32)   # 8 rows -> sublane aligned
    for i, name in enumerate(
            ["b_hv", "b_ha", "b_v", "b_a", "ln_gamma", "ln_beta"]):
        vec = vec.at[i, :d_text].set(params[name].reshape(-1))

    return {"W_t": wt, "W_v": wv, "W_a": wa, "vec": vec,
            "d_text": d_text, "d_video": d_video, "d_audio": d_audio}


def mia_forward(text_feats, video_feats, audio_feats, label_ids, packed,
                *, token_tile=256, out_dtype=jnp.float32):
    """MIA.forward: (cast video/audio to f32 inside the kernel) + MAG fusion."""
    del label_ids  # unused for non-'msz' methods
    B, L, Dt = text_feats.shape
    Dv = video_feats.shape[-1]
    Da = audio_feats.shape[-1]
    assert Dt == packed["d_text"] and Dv == packed["d_video"] and Da == packed["d_audio"]

    dtp = packed["W_t"].shape[0]
    dvp = packed["W_v"].shape[0]
    dap = packed["W_a"].shape[0]

    N = B * L
    tile = min(token_tile, _round_up(N, SUBLANE))
    tile = _round_up(tile, SUBLANE)
    n_pad = _round_up(N, tile)

    def prep(x, d, d_pad):
        # NOTE: no wrapper-side .float() cast -- keep input dtype on HBM.
        x = x.reshape(N, d)
        if n_pad != N or d_pad != d:
            x = jnp.pad(x, ((0, n_pad - N), (0, d_pad - d)))
        return x

    txt = prep(text_feats, Dt, dtp)
    vid = prep(video_feats, Dv, dvp)
    aud = prep(audio_feats, Da, dap)

    tok_spec = lambda d: pl.BlockSpec((tile, d), lambda i: (i, 0))
    full_spec = lambda shape: pl.BlockSpec(shape, lambda i: (0,) * len(shape))

    # VMEM budget: double-buffered token tiles + (conservatively) 2x weights,
    # 1.5x safety margin, clamped to [32 MiB, 64 MiB] (v7x physical ceiling).
    tok_bytes = 2 * tile * (txt.dtype.itemsize * dtp
                            + vid.dtype.itemsize * dvp
                            + aud.dtype.itemsize * dap
                            + jnp.dtype(out_dtype).itemsize * dtp)
    w_bytes = 4 * (dtp * 2 * dtp + dvp * 2 * dtp + dap * 2 * dtp + 8 * dtp)
    vmem_limit = int(1.5 * (tok_bytes + 2 * w_bytes)) + (4 << 20)
    vmem_limit = max(32 << 20, min(vmem_limit, 64 << 20))

    kernel = functools.partial(_mag_kernel, d_text=Dt, d_text_pad=dtp)

    out = pl.pallas_call(
        kernel,
        out_shape=jax.ShapeDtypeStruct((n_pad, dtp), out_dtype),
        grid_spec=pltpu.PrefetchScalarGridSpec(
            num_scalar_prefetch=0,
            grid=(n_pad // tile,),
            in_specs=[tok_spec(dtp), tok_spec(dvp), tok_spec(dap),
                      full_spec(packed["W_t"].shape),
                      full_spec(packed["W_v"].shape),
                      full_spec(packed["W_a"].shape),
                      full_spec(packed["vec"].shape)],
            out_specs=pl.BlockSpec((tile, dtp), lambda i: (i, 0)),
        ),
        compiler_params=pltpu.CompilerParams(
            dimension_semantics=("parallel",),   # independent token tiles
            vmem_limit_bytes=vmem_limit),
    )(txt, vid, aud, packed["W_t"], packed["W_v"], packed["W_a"], packed["vec"])

    return out[:N, :Dt].reshape(B, L, Dt)


def init_params(key, d_text, d_video, d_audio):
    ks = jax.random.split(key, 6)
    scale = 0.02
    return {
        # W_hv acts on [text; video] -> split into text-part and video-part.
        "W_hv_t": scale * jax.random.normal(ks[0], (d_text, d_text), jnp.float32),
        "W_hv_v": scale * jax.random.normal(ks[1], (d_video, d_text), jnp.float32),
        "b_hv": jnp.zeros((1, d_text), jnp.float32),
        "W_ha_t": scale * jax.random.normal(ks[2], (d_text, d_text), jnp.float32),
        "W_ha_a": scale * jax.random.normal(ks[3], (d_audio, d_text), jnp.float32),
        "b_ha": jnp.zeros((1, d_text), jnp.float32),
        "W_v": scale * jax.random.normal(ks[4], (d_video, d_text), jnp.float32),
        "b_v": jnp.zeros((1, d_text), jnp.float32),
        "W_a": scale * jax.random.normal(ks[5], (d_audio, d_text), jnp.float32),
        "b_a": jnp.zeros((1, d_text), jnp.float32),
        "ln_gamma": jnp.ones((1, d_text), jnp.float32),
        "ln_beta": jnp.zeros((1, d_text), jnp.float32),
    }


def _reference(text, video, audio, params):
    """Pure-JAX reference for a sanity check."""
    t = text.astype(jnp.float32)
    v = video.astype(jnp.float32)
    a = audio.astype(jnp.float32)
    gate_v = jax.nn.relu(t @ params["W_hv_t"] + v @ params["W_hv_v"] + params["b_hv"])
    gate_a = jax.nn.relu(t @ params["W_ha_t"] + a @ params["W_ha_a"] + params["b_ha"])
    h_m = (gate_v * (v @ params["W_v"] + params["b_v"])
           + gate_a * (a @ params["W_a"] + params["b_a"]))
    em_n = jnp.sqrt(jnp.sum(t * t, -1, keepdims=True))
    hm_n = jnp.sqrt(jnp.sum(h_m * h_m, -1, keepdims=True)) + NORM_EPS
    alpha = jnp.minimum(em_n / hm_n * BETA_SHIFT, 1.0)
    emb = t + alpha * h_m
    mean = jnp.mean(emb, -1, keepdims=True)
    var = jnp.mean((emb - mean) ** 2, -1, keepdims=True)
    return ((emb - mean) * jax.lax.rsqrt(var + LN_EPS)
            * params["ln_gamma"] + params["ln_beta"])


if __name__ == "__main__":
    D_TEXT, D_VIDEO, D_AUDIO = 32, 16, 16

    root = jax.random.PRNGKey(0)
    k_t, k_v, k_a, k_p = jax.random.split(root, 4)
    params = init_params(k_p, D_TEXT, D_VIDEO, D_AUDIO)
    packed = pack_params(params, D_TEXT, D_VIDEO, D_AUDIO)

    # --- case 1: tile-divisible batch*seq -------------------------------
    B, L = 2, 8
    text_feats = jax.random.normal(k_t, (B, L, D_TEXT), jnp.float32)
    # video/audio arrive in a lower precision; MIA.forward casts to float32
    # (done inside the kernel here).
    video_feats = jax.random.normal(k_v, (B, L, D_VIDEO), jnp.float32).astype(jnp.bfloat16)
    audio_feats = jax.random.normal(k_a, (B, L, D_AUDIO), jnp.float32).astype(jnp.bfloat16)
    label_ids = jnp.zeros((B,), jnp.int32)

    out = mia_forward(text_feats, video_feats, audio_feats, label_ids, packed)
    out = jax.block_until_ready(out)
    ref = _reference(text_feats, video_feats, audio_feats, params)
    assert out.shape == (B, L, D_TEXT)
    assert jnp.allclose(out, ref, atol=1e-4, rtol=1e-4)

    # --- case 2: ragged batch*seq (exercises zero-padded tail) -----------
    B2, L2 = 3, 5
    t2 = jax.random.normal(jax.random.fold_in(k_t, 1), (B2, L2, D_TEXT), jnp.float32)
    v2 = jax.random.normal(jax.random.fold_in(k_v, 1), (B2, L2, D_VIDEO), jnp.float32).astype(jnp.bfloat16)
    a2 = jax.random.normal(jax.random.fold_in(k_a, 1), (B2, L2, D_AUDIO), jnp.float32).astype(jnp.bfloat16)
    out2 = jax.block_until_ready(
        mia_forward(t2, v2, a2, jnp.zeros((B2,), jnp.int32), packed))
    ref2 = _reference(t2, v2, a2, params)
    assert out2.shape == (B2, L2, D_TEXT)
    assert jnp.allclose(out2, ref2, atol=1e-4, rtol=1e-4)

    print("KERNEL_OK")
</pallas_src>

<mosaic_0001>
module attributes {stable_mosaic.version = 11 : i64} {
  func.func @_mag_kernel(%arg0: i32, %arg1: memref<16x128xf32, #tpu.memory_space<vmem>>, %arg2: memref<16x128xbf16, #tpu.memory_space<vmem>>, %arg3: memref<16x128xbf16, #tpu.memory_space<vmem>>, %arg4: memref<128x256xf32, #tpu.memory_space<vmem>>, %arg5: memref<128x256xf32, #tpu.memory_space<vmem>>, %arg6: memref<128x256xf32, #tpu.memory_space<vmem>>, %arg7: memref<8x128xf32, #tpu.memory_space<vmem>>, %arg8: memref<16x128xf32, #tpu.memory_space<vmem>>) attributes {dimension_semantics = [#tpu.dimension_semantics<parallel>], iteration_bounds = array<i64: 1>, scalar_prefetch = 0 : i64, scratch_operands = 0 : i64, tpu.core_type = #tpu.core_type<tc>, window_params = [{transform_indices = @transform_0, window_bounds = array<i64: 16, 128>}, {transform_indices = @transform_1, window_bounds = array<i64: 16, 128>}, {transform_indices = @transform_2, window_bounds = array<i64: 16, 128>}, {pipeline_mode = #tpu.pipeline_mode<synchronous>, transform_indices = @transform_3, window_bounds = array<i64: 128, 256>}, {pipeline_mode = #tpu.pipeline_mode<synchronous>, transform_indices = @transform_4, window_bounds = array<i64: 128, 256>}, {pipeline_mode = #tpu.pipeline_mode<synchronous>, transform_indices = @transform_5, window_bounds = array<i64: 128, 256>}, {pipeline_mode = #tpu.pipeline_mode<synchronous>, transform_indices = @transform_6, window_bounds = array<i64: 8, 128>}, {transform_indices = @transform_7, window_bounds = array<i64: 16, 128>}]} {
    %c0 = arith.constant 0 : index
    %c0_0 = arith.constant 0 : index
    %0 = vector.load %arg1[%c0, %c0_0] : memref<16x128xf32, #tpu.memory_space<vmem>>, vector<16x128xf32>
    %c0_1 = arith.constant 0 : index
    %c0_2 = arith.constant 0 : index
    %1 = vector.load %arg2[%c0_1, %c0_2] : memref<16x128xbf16, #tpu.memory_space<vmem>>, vector<16x128xbf16>
    %2 = arith.extf %1 : vector<16x128xbf16> to vector<16x128xf32>
    %c0_3 = arith.constant 0 : index
    %c0_4 = arith.constant 0 : index
    %3 = vector.load %arg3[%c0_3, %c0_4] : memref<16x128xbf16, #tpu.memory_space<vmem>>, vector<16x128xbf16>
    %4 = arith.extf %3 : vector<16x128xbf16> to vector<16x128xf32>
    %c0_5 = arith.constant 0 : index
    %c0_6 = arith.constant 0 : index
    %5 = vector.load %arg4[%c0_5, %c0_6] : memref<128x256xf32, #tpu.memory_space<vmem>>, vector<128x256xf32>
    %cst = arith.constant dense<0.000000e+00> : vector<16x256xf32>
    %6 = tpu.matmul %0, %5, %cst {dimension_numbers = #tpu.dot_dimension_numbers<[1], [0], [0], [1], [0, 0, 1, 1], [], []>} : vector<16x128xf32>, vector<128x256xf32>, vector<16x256xf32> -> vector<16x256xf32>
    %c0_7 = arith.constant 0 : index
    %c0_8 = arith.constant 0 : index
    %7 = vector.load %arg5[%c0_7, %c0_8] : memref<128x256xf32, #tpu.memory_space<vmem>>, vector<128x256xf32>
    %cst_9 = arith.constant dense<0.000000e+00> : vector<16x256xf32>
    %8 = tpu.matmul %2, %7, %cst_9 {dimension_numbers = #tpu.dot_dimension_numbers<[1], [0], [0], [1], [0, 0, 1, 1], [], []>} : vector<16x128xf32>, vector<128x256xf32>, vector<16x256xf32> -> vector<16x256xf32>
    %c0_10 = arith.constant 0 : index
    %c0_11 = arith.constant 0 : index
    %9 = vector.load %arg6[%c0_10, %c0_11] : memref<128x256xf32, #tpu.memory_space<vmem>>, vector<128x256xf32>
    %cst_12 = arith.constant dense<0.000000e+00> : vector<16x256xf32>
    %10 = tpu.matmul %4, %9, %cst_12 {dimension_numbers = #tpu.dot_dimension_numbers<[1], [0], [0], [1], [0, 0, 1, 1], [], []>} : vector<16x128xf32>, vector<128x256xf32>, vector<16x256xf32> -> vector<16x256xf32>
    %c0_13 = arith.constant 0 : index
    %c0_14 = arith.constant 0 : index
    %11 = vector.load %arg7[%c0_13, %c0_14] : memref<8x128xf32, #tpu.memory_space<vmem>>, vector<1x128xf32>
    %c1 = arith.constant 1 : index
    %c0_15 = arith.constant 0 : index
    %12 = vector.load %arg7[%c1, %c0_15] : memref<8x128xf32, #tpu.memory_space<vmem>>, vector<1x128xf32>
    %c2 = arith.constant 2 : index
    %c0_16 = arith.constant 0 : index
    %13 = vector.load %arg7[%c2, %c0_16] : memref<8x128xf32, #tpu.memory_space<vmem>>, vector<1x128xf32>
    %c3 = arith.constant 3 : index
    %c0_17 = arith.constant 0 : index
    %14 = vector.load %arg7[%c3, %c0_17] : memref<8x128xf32, #tpu.memory_space<vmem>>, vector<1x128xf32>
    %c4 = arith.constant 4 : index
    %c0_18 = arith.constant 0 : index
    %15 = vector.load %arg7[%c4, %c0_18] : memref<8x128xf32, #tpu.memory_space<vmem>>, vector<1x128xf32>
    %c5 = arith.constant 5 : index
    %c0_19 = arith.constant 0 : index
    %16 = vector.load %arg7[%c5, %c0_19] : memref<8x128xf32, #tpu.memory_space<vmem>>, vector<1x128xf32>
    %17 = vector.extract_strided_slice %6 {offsets = [0, 0], sizes = [16, 128], strides = [1, 1]} : vector<16x256xf32> to vector<16x128xf32>
    %18 = vector.extract_strided_slice %8 {offsets = [0, 0], sizes = [16, 128], strides = [1, 1]} : vector<16x256xf32> to vector<16x128xf32>
    %19 = arith.addf %17, %18 : vector<16x128xf32>
    %20 = vector.broadcast %11 : vector<1x128xf32> to vector<16x128xf32>
    %21 = arith.addf %19, %20 : vector<16x128xf32>
    %cst_20 = arith.constant 0.000000e+00 : f32
    %22 = vector.broadcast %cst_20 : f32 to vector<16x128xf32>
    %23 = arith.maximumf %21, %22 : vector<16x128xf32>
    %24 = vector.extract_strided_slice %6 {offsets = [0, 128], sizes = [16, 128], strides = [1, 1]} : vector<16x256xf32> to vector<16x128xf32>
    %25 = vector.extract_strided_slice %10 {offsets = [0, 0], sizes = [16, 128], strides = [1, 1]} : vector<16x256xf32> to vector<16x128xf32>
    %26 = arith.addf %24, %25 : vector<16x128xf32>
    %27 = vector.broadcast %12 : vector<1x128xf32> to vector<16x128xf32>
    %28 = arith.addf %26, %27 : vector<16x128xf32>
    %cst_21 = arith.constant 0.000000e+00 : f32
    %29 = vector.broadcast %cst_21 : f32 to vector<16x128xf32>
    %30 = arith.maximumf %28, %29 : vector<16x128xf32>
    %31 = vector.extract_strided_slice %8 {offsets = [0, 128], sizes = [16, 128], strides = [1, 1]} : vector<16x256xf32> to vector<16x128xf32>
    %32 = vector.broadcast %13 : vector<1x128xf32> to vector<16x128xf32>
    %33 = arith.addf %31, %32 : vector<16x128xf32>
    %34 = vector.extract_strided_slice %10 {offsets = [0, 128], sizes = [16, 128], strides = [1, 1]} : vector<16x256xf32> to vector<16x128xf32>
    %35 = vector.broadcast %14 : vector<1x128xf32> to vector<16x128xf32>
    %36 = arith.addf %34, %35 : vector<16x128xf32>
    %37 = arith.mulf %23, %33 : vector<16x128xf32>
    %38 = arith.mulf %30, %36 : vector<16x128xf32>
    %39 = arith.addf %37, %38 : vector<16x128xf32>
    %40 = arith.mulf %0, %0 : vector<16x128xf32>
    %cst_22 = arith.constant dense<0.000000e+00> : vector<16xf32>
    %41 = vector.multi_reduction <add>, %40, %cst_22 [1] : vector<16x128xf32> to vector<16xf32>
    %42 = vector.shape_cast %41 : vector<16xf32> to vector<16x1xf32>
    %43 = math.sqrt %42 : vector<16x1xf32>
    %44 = arith.mulf %39, %39 : vector<16x128xf32>
    %cst_23 = arith.constant dense<0.000000e+00> : vector<16xf32>
    %45 = vector.multi_reduction <add>, %44, %cst_23 [1] : vector<16x128xf32> to vector<16xf32>
    %46 = vector.shape_cast %45 : vector<16xf32> to vector<16x1xf32>
    %47 = math.sqrt %46 : vector<16x1xf32>
    %cst_24 = arith.constant 9.99999997E-7 : f32
    %48 = vector.broadcast %cst_24 : f32 to vector<16x1xf32>
    %49 = arith.addf %47, %48 : vector<16x1xf32>
    %50 = tpu.reciprocal %49 : vector<16x1xf32> -> vector<16x1xf32>
    %51 = arith.mulf %43, %50 : vector<16x1xf32>
    %cst_25 = arith.constant 1.000000e+00 : f32
    %52 = vector.broadcast %cst_25 : f32 to vector<16x1xf32>
    %53 = arith.mulf %51, %52 : vector<16x1xf32>
    %cst_26 = arith.constant 1.000000e+00 : f32
    %54 = vector.broadcast %cst_26 : f32 to vector<16x1xf32>
    %55 = arith.minimumf %53, %54 : vector<16x1xf32>
    %56 = vector.broadcast %55 : vector<16x1xf32> to vector<16x128xf32>
    %57 = arith.mulf %56, %39 : vector<16x128xf32>
    %58 = arith.addf %0, %57 : vector<16x128xf32>
    %cst_27 = arith.constant dense<0.000000e+00> : vector<16xf32>
    %59 = vector.multi_reduction <add>, %58, %cst_27 [1] : vector<16x128xf32> to vector<16xf32>
    %60 = vector.shape_cast %59 : vector<16xf32> to vector<16x1xf32>
    %cst_28 = arith.constant 3.125000e-02 : f32
    %61 = vector.broadcast %cst_28 : f32 to vector<16x1xf32>
    %62 = arith.mulf %60, %61 : vector<16x1xf32>
    %63 = arith.mulf %58, %58 : vector<16x128xf32>
    %cst_29 = arith.constant dense<0.000000e+00> : vector<16xf32>
    %64 = vector.multi_reduction <add>, %63, %cst_29 [1] : vector<16x128xf32> to vector<16xf32>
    %65 = vector.shape_cast %64 : vector<16xf32> to vector<16x1xf32>
    %cst_30 = arith.constant 3.125000e-02 : f32
    %66 = vector.broadcast %cst_30 : f32 to vector<16x1xf32>
    %67 = arith.mulf %65, %66 : vector<16x1xf32>
    %68 = arith.mulf %62, %62 : vector<16x1xf32>
    %69 = arith.subf %67, %68 : vector<16x1xf32>
    %70 = vector.broadcast %62 : vector<16x1xf32> to vector<16x128xf32>
    %71 = arith.subf %58, %70 : vector<16x128xf32>
    %cst_31 = arith.constant 9.99999974E-6 : f32
    %72 = vector.broadcast %cst_31 : f32 to vector<16x1xf32>
    %73 = arith.addf %69, %72 : vector<16x1xf32>
    %74 = math.rsqrt %73 : vector<16x1xf32>
    %75 = vector.broadcast %74 : vector<16x1xf32> to vector<16x128xf32>
    %76 = arith.mulf %71, %75 : vector<16x128xf32>
    %77 = vector.broadcast %15 : vector<1x128xf32> to vector<16x128xf32>
    %78 = arith.mulf %76, %77 : vector<16x128xf32>
    %79 = vector.broadcast %16 : vector<1x128xf32> to vector<16x128xf32>
    %80 = arith.addf %78, %79 : vector<16x128xf32>
    %c0_32 = arith.constant 0 : index
    %c0_33 = arith.constant 0 : index
    %81 = vector.load %arg8[%c0_32, %c0_33] : memref<16x128xf32, #tpu.memory_space<vmem>>, vector<16x128xf32>
    tpu.vector_store %arg8[%c0_32, %c0_33], %80 {strides = array<i32>} : memref<16x128xf32, #tpu.memory_space<vmem>>, vector<16x128xf32>,
    return
  }
  func.func @transform_0(%arg0: i32) -> (i32, i32) {
    %c0_i32 = arith.constant 0 : i32
    %c0_i32_0 = arith.constant 0 : i32
    return %arg0, %c0_i32 : i32, i32
  }
  func.func @transform_1(%arg0: i32) -> (i32, i32) {
    %c0_i32 = arith.constant 0 : i32
    %c0_i32_0 = arith.constant 0 : i32
    return %arg0, %c0_i32 : i32, i32
  }
  func.func @transform_2(%arg0: i32) -> (i32, i32) {
    %c0_i32 = arith.constant 0 : i32
    %c0_i32_0 = arith.constant 0 : i32
    return %arg0, %c0_i32 : i32, i32
  }
  func.func @transform_3(%arg0: i32) -> (i32, i32) {
    %c0_i32 = arith.constant 0 : i32
    %c0_i32_0 = arith.constant 0 : i32
    %c0_i32_1 = arith.constant 0 : i32
    return %c0_i32, %c0_i32_0 : i32, i32
  }
  func.func @transform_4(%arg0: i32) -> (i32, i32) {
    %c0_i32 = arith.constant 0 : i32
    %c0_i32_0 = arith.constant 0 : i32
    %c0_i32_1 = arith.constant 0 : i32
    return %c0_i32, %c0_i32_0 : i32, i32
  }
  func.func @transform_5(%arg0: i32) -> (i32, i32) {
    %c0_i32 = arith.constant 0 : i32
    %c0_i32_0 = arith.constant 0 : i32
    %c0_i32_1 = arith.constant 0 : i32
    return %c0_i32, %c0_i32_0 : i32, i32
  }
  func.func @transform_6(%arg0: i32) -> (i32, i32) {
    %c0_i32 = arith.constant 0 : i32
    %c0_i32_0 = arith.constant 0 : i32
    %c0_i32_1 = arith.constant 0 : i32
    return %c0_i32, %c0_i32_0 : i32, i32
  }
  func.func @transform_7(%arg0: i32) -> (i32, i32) {
    %c0_i32 = arith.constant 0 : i32
    %c0_i32_0 = arith.constant 0 : i32
    return %arg0, %c0_i32 : i32, i32
  }
}

</mosaic_0001>

<llo_original>
// kernel: tpu_custom_call.1
$region0: #{tpu_custom_call.1}
  #allocation0 [shape = 'u32[]', space=smem, size = 0x4, offset = 0x4, fixed_abs, tag = 'smem constant byte address 0x4 - core index']
  #allocation1 [shape = 'u32[144,128]{1,0:T(1,128)}', space=vmem, size = 0x12000, scoped, tag = 'internal scratch']
  %s0 = inlined_call_operand.hbm [shape: f32[16,128], index: 0, kind: input, shape index: {}]
  %s1 = inlined_call_operand.hbm [shape: bf16[16,128], index: 1, kind: input, shape index: {}]
  %s2 = inlined_call_operand.hbm [shape: bf16[16,128], index: 2, kind: input, shape index: {}]
  %s3 = inlined_call_operand.hbm [shape: f32[128,256], index: 3, kind: input, shape index: {}]
  %s4 = inlined_call_operand.hbm [shape: f32[128,256], index: 4, kind: input, shape index: {}]
  %s5 = inlined_call_operand.hbm [shape: f32[128,256], index: 5, kind: input, shape index: {}]
  %s6 = inlined_call_operand.vmem [shape: f32[8,128], index: 6, kind: input, shape index: {}]
  %s7 = inlined_call_operand.hbm [shape: f32[16,128], index: 7, kind: output, shape index: {}]
  %s8 = sld [smem:[#allocation0]]
  $region62: #{tpu_custom_call.1} parent=0
    _
  %s10 = ssub.s32 1, %s8
  %s11 = scalar_select 0, %s10, %s8
  $region1: #{tpu_custom_call.1} parent=0
    #allocation2 [shape = 'u8[8192]{0}', space=vmem, size = 0x2000, scoped, tag = 'input window, operand 0, single buffered']
    #allocation3 [shape = 's32[1]{0}', space=sflag, size = 0x4, scoped, tag = 'scoped memory for tpu_custom_call.1']
    #allocation4 [shape = 's32[1]{0}', space=sflag, size = 0x4, scoped, tag = 'scoped memory for tpu_custom_call.1']
    #allocation5 [shape = 'u8[4096]{0}', space=vmem, size = 0x1000, scoped, tag = 'input window, operand 1, single buffered']
    #allocation6 [shape = 's32[1]{0}', space=sflag, size = 0x4, scoped, tag = 'scoped memory for tpu_custom_call.1']
    #allocation7 [shape = 'u8[4096]{0}', space=vmem, size = 0x1000, scoped, tag = 'input window, operand 2, single buffered']
    #allocation8 [shape = 'u8[131072]{0}', space=vmem, size = 0x20000, scoped, tag = 'input window, operand 3, single buffered']
    #allocation9 [shape = 's32[1]{0}', space=sflag, size = 0x4, scoped, tag = 'scoped memory for tpu_custom_call.1']
    #allocation10 [shape = 'u8[131072]{0}', space=vmem, size = 0x20000, scoped, tag = 'input window, operand 4, single buffered']
    #allocation11 [shape = 'u8[131072]{0}', space=vmem, size = 0x20000, scoped, tag = 'input window, operand 5, single buffered']
    #allocation12 [shape = 's32[1]{0}', space=sflag, size = 0x4, scoped, tag = 'scoped memory for tpu_custom_call.1']
    #allocation13 [shape = 'u8[8192]{0}', space=vmem, size = 0x2000, scoped, tag = 'output window, operand 0, single buffered']
    %12 = vsyncpa [#allocation3], 0
    %13 = vsyncpa [#allocation6], 0
    %14 = vsyncpa [#allocation9], 0
    %15 = vsyncpa [#allocation12], 0
    %16 = vsyncpa [#allocation4], 0
    // Predicated region
    $region2: #{tpu_custom_call.1} parent=1 // pred_check
      _
    $region3: #{tpu_custom_call.1} parent=1 // pred_check_branch
      %18 = sbr.rel (0) target = $region5
    $region4: #{tpu_custom_call.1} parent=1 // pred_region
      %s20 = ssub.s32 256, 256
      %21 = vsyncadd [#allocation3], %s20
      %s22 = sshll.u32 [#allocation2], 4
      %s23 = int_to_ptr.vmem [resolvable:$true] %s22
      %28 = dma.hbm_to_vmem [thread:$0]  %s0, 256, %s23, [#allocation3], 128, 128, 8
    $region5: #{tpu_custom_call.1} parent=1 // pred_fallthru
      _
    // Predicated region
    $region6: #{tpu_custom_call.1} parent=1 // pred_check
      _
    $region7: #{tpu_custom_call.1} parent=1 // pred_check_branch
      %30 = sbr.rel (0) target = $region9
    $region8: #{tpu_custom_call.1} parent=1 // pred_region
      %s32 = ssub.s32 128, 128
      %33 = vsyncadd [#allocation6], %s32
      %s34 = sshll.u32 [#allocation5], 4
      %s35 = int_to_ptr.vmem [resolvable:$true] %s34
      %40 = dma.hbm_to_vmem [thread:$0]  %s1, 128, %s35, [#allocation6], 64, 64, 4
    $region9: #{tpu_custom_call.1} parent=1 // pred_fallthru
      _
    // Predicated region
    $region10: #{tpu_custom_call.1} parent=1 // pred_check
      _
    $region11: #{tpu_custom_call.1} parent=1 // pred_check_branch
      %42 = sbr.rel (0) target = $region13
    $region12: #{tpu_custom_call.1} parent=1 // pred_region
      %s44 = ssub.s32 128, 128
      %45 = vsyncadd [#allocation6], %s44
      %s46 = sshll.u32 [#allocation7], 4
      %s47 = int_to_ptr.vmem [resolvable:$true] %s46
      %52 = dma.hbm_to_vmem [thread:$0]  %s2, 128, %s47, [#allocation6], 64, 64, 4
    $region13: #{tpu_custom_call.1} parent=1 // pred_fallthru
      _
    // Predicated region
    $region14: #{tpu_custom_call.1} parent=1 // pred_check
      _
    $region15: #{tpu_custom_call.1} parent=1 // pred_check_branch
      %54 = sbr.rel (0) target = $region17
    $region16: #{tpu_custom_call.1} parent=1 // pred_region
      %s56 = ssub.s32 4096, 4096
      %57 = vsyncadd [#allocation9], %s56
      %s58 = sshll.u32 [#allocation8], 4
      %s59 = int_to_ptr.vmem [resolvable:$true] %s58
      %64 = dma.hbm_to_vmem [thread:$0]  %s3, 4096, %s59, [#allocation9], 256, 256, 16
    $region17: #{tpu_custom_call.1} parent=1 // pred_fallthru
      _
    // Predicated region
    $region18: #{tpu_custom_call.1} parent=1 // pred_check
      _
    $region19: #{tpu_custom_call.1} parent=1 // pred_check_branch
      %66 = sbr.rel (0) target = $region21
    $region20: #{tpu_custom_call.1} parent=1 // pred_region
      %s68 = ssub.s32 4096, 4096
      %69 = vsyncadd [#allocation9], %s68
      %s70 = sshll.u32 [#allocation10], 4
      %s71 = int_to_ptr.vmem [resolvable:$true] %s70
      %76 = dma.hbm_to_vmem [thread:$0]  %s4, 4096, %s71, [#allocation9], 256, 256, 16
    $region21: #{tpu_custom_call.1} parent=1 // pred_fallthru
      _
    // Predicated region
    $region22: #{tpu_custom_call.1} parent=1 // pred_check
      _
    $region23: #{tpu_custom_call.1} parent=1 // pred_check_branch
      %78 = sbr.rel (0) target = $region25
    $region24: #{tpu_custom_call.1} parent=1 // pred_region
      %s80 = ssub.s32 4096, 4096
      %81 = vsyncadd [#allocation12], %s80
      %s82 = sshll.u32 [#allocation11], 4
      %s83 = int_to_ptr.vmem [resolvable:$true] %s82
      %88 = dma.hbm_to_vmem [thread:$0]  %s5, 4096, %s83, [#allocation12], 256, 256, 16
    $region25: #{tpu_custom_call.1} parent=1 // pred_fallthru
      _
    // Predicated region
    $region26: #{tpu_custom_call.1} parent=1 // pred_check
      _
    $region27: #{tpu_custom_call.1} parent=1 // pred_check_branch
      %90 = sbr.rel (0) target = $region29
    $region28: #{tpu_custom_call.1} parent=1 // pred_region
      _
    $region29: #{tpu_custom_call.1} parent=1 // pred_fallthru
      _
    // Predicated region
    $region30: #{tpu_custom_call.1} parent=1 // pred_check
      _
    $region31: #{tpu_custom_call.1} parent=1 // pred_check_branch
      %92 = sbr.rel (0) target = $region33
    $region32: #{tpu_custom_call.1} parent=1 // pred_region
      %93 = dma.done [#allocation3], 256
    $region33: #{tpu_custom_call.1} parent=1 // pred_fallthru
      _
    // Predicated region
    $region34: #{tpu_custom_call.1} parent=1 // pred_check
      _
    $region35: #{tpu_custom_call.1} parent=1 // pred_check_branch
      %95 = sbr.rel (0) target = $region37
    $region36: #{tpu_custom_call.1} parent=1 // pred_region
      %96 = dma.done [#allocation6], 128
    $region37: #{tpu_custom_call.1} parent=1 // pred_fallthru
      _
    // Predicated region
    $region38: #{tpu_custom_call.1} parent=1 // pred_check
      _
    $region39: #{tpu_custom_call.1} parent=1 // pred_check_branch
      %98 = sbr.rel (0) target = $region41
    $region40: #{tpu_custom_call.1} parent=1 // pred_region
      %99 = dma.done [#allocation6], 128
    $region41: #{tpu_custom_call.1} parent=1 // pred_fallthru
      _
    // Predicated region
    $region42: #{tpu_custom_call.1} parent=1 // pred_check
      _
    $region43: #{tpu_custom_call.1} parent=1 // pred_check_branch
      %101 = sbr.rel (0) target = $region45
    $region44: #{tpu_custom_call.1} parent=1 // pred_region
      %102 = dma.done [#allocation9], 4096
    $region45: #{tpu_custom_call.1} parent=1 // pred_fallthru
      _
    // Predicated region
    $region46: #{tpu_custom_call.1} parent=1 // pred_check
      _
    $region47: #{tpu_custom_call.1} parent=1 // pred_check_branch
      %104 = sbr.rel (0) target = $region49
    $region48: #{tpu_custom_call.1} parent=1 // pred_region
      %105 = dma.done [#allocation9], 4096
    $region49: #{tpu_custom_call.1} parent=1 // pred_fallthru
      _
    // Predicated region
    $region50: #{tpu_custom_call.1} parent=1 // pred_check
      _
    $region51: #{tpu_custom_call.1} parent=1 // pred_check_branch
      %107 = sbr.rel (0) target = $region53
    $region52: #{tpu_custom_call.1} parent=1 // pred_region
      %108 = dma.done [#allocation12], 4096
    $region53: #{tpu_custom_call.1} parent=1 // pred_fallthru
      _
    %v109 = vld [vmem:[#allocation2] sm:$0xff]
    %v110 = vld [vmem:[#allocation2 + $0x8] sm:$0xff]
    %v111 = vld [vmem:[#allocation5] sm:$0xf]
    %v112 = vld [vmem:[#allocation5 + $0x4] sm:$0xf]
    %v113 = vunpack.c.l.bf16 %v111
    %v114 = vunpack.c.l.bf16 %v112
    %v115 = vld [vmem:[#allocation7] sm:$0xf]
    %v116 = vld [vmem:[#allocation7 + $0x4] sm:$0xf]
    %v117 = vunpack.c.l.bf16 %v115
    %v118 = vunpack.c.l.bf16 %v116
    %v119 = vld [vmem:[#allocation8] sm:$0xff]
    %v120 = vld [vmem:[#allocation8 + $0x8] sm:$0xff]
    %v121 = vld [vmem:[#allocation8 + $0x10] sm:$0xff]
    %v122 = vld [vmem:[#allocation8 + $0x18] sm:$0xff]
    %v123 = vld [vmem:[#allocation8 + $0x20] sm:$0xff]
    %v124 = vld [vmem:[#allocation8 + $0x28] sm:$0xff]
    %v125 = vld [vmem:[#allocation8 + $0x30] sm:$0xff]
    %v126 = vld [vmem:[#allocation8 + $0x38] sm:$0xff]
    %v127 = vld [vmem:[#allocation8 + $0x40] sm:$0xff]
    %v128 = vld [vmem:[#allocation8 + $0x48] sm:$0xff]
    %v129 = vld [vmem:[#allocation8 + $0x50] sm:$0xff]
    %v130 = vld [vmem:[#allocation8 + $0x58] sm:$0xff]
    %v131 = vld [vmem:[#allocation8 + $0x60] sm:$0xff]
    %v132 = vld [vmem:[#allocation8 + $0x68] sm:$0xff]
    %v133 = vld [vmem:[#allocation8 + $0x70] sm:$0xff]
    %v134 = vld [vmem:[#allocation8 + $0x78] sm:$0xff]
    %v135 = vld [vmem:[#allocation8 + $0x80] sm:$0xff]
    %v136 = vld [vmem:[#allocation8 + $0x88] sm:$0xff]
    %v137 = vld [vmem:[#allocation8 + $0x90] sm:$0xff]
    %v138 = vld [vmem:[#allocation8 + $0x98] sm:$0xff]
    %v139 = vld [vmem:[#allocation8 + $0xa0] sm:$0xff]
    %v140 = vld [vmem:[#allocation8 + $0xa8] sm:$0xff]
    %v141 = vld [vmem:[#allocation8 + $0xb0] sm:$0xff]
    %v142 = vld [vmem:[#allocation8 + $0xb8] sm:$0xff]
    %v143 = vld [vmem:[#allocation8 + $0xc0] sm:$0xff]
    %v144 = vld [vmem:[#allocation8 + $0xc8] sm:$0xff]
    %v145 = vld [vmem:[#allocation8 + $0xd0] sm:$0xff]
    %v146 = vld [vmem:[#allocation8 + $0xd8] sm:$0xff]
    %v147 = vld [vmem:[#allocation8 + $0xe0] sm:$0xff]
    %v148 = vld [vmem:[#allocation8 + $0xe8] sm:$0xff]
    %v149 = vld [vmem:[#allocation8 + $0xf0] sm:$0xff]
    %v150 = vld [vmem:[#allocation8 + $0xf8] sm:$0xff]
    %151 = vmatprep.subr.mxu0 %v120
    %152 = vmatpush1.msra.mxu0 %v119
    %153 = vmatprep.subr.mxu0 %v122
    %154 = vmatpush1.msra.mxu0 %v121
    %155 = vmatprep.subr.mxu0 %v124
    %156 = vmatpush1.msra.mxu0 %v123
    %157 = vmatprep.subr.mxu0 %v126
    %158 = vmatpush1.msra.mxu0 %v125
    %159 = vmatprep.subr.mxu0 %v128
    %160 = vmatpush1.msra.mxu0 %v127
    %161 = vmatprep.subr.mxu0 %v130
    %162 = vmatpush1.msra.mxu0 %v129
    %163 = vmatprep.subr.mxu0 %v132
    %164 = vmatpush1.msra.mxu0 %v131
    %165 = vmatprep.subr.mxu0 %v134
    %166 = vmatpush1.msra.mxu0 %v133
    %167 = vmatprep.subr.mxu0 %v136
    %168 = vmatpush1.msra.mxu0 %v135
    %169 = vmatprep.subr.mxu0 %v138
    %170 = vmatpush1.msra.mxu0 %v137
    %171 = vmatprep.subr.mxu0 %v140
    %172 = vmatpush1.msra.mxu0 %v139
    %173 = vmatprep.subr.mxu0 %v142
    %174 = vmatpush1.msra.mxu0 %v141
    %175 = vmatprep.subr.mxu0 %v144
    %176 = vmatpush1.msra.mxu0 %v143
    %177 = vmatprep.subr.mxu0 %v146
    %178 = vmatpush1.msra.mxu0 %v145
    %179 = vmatprep.subr.mxu0 %v148
    %180 = vmatpush1.msra.mxu0 %v147
    %181 = vmatprep.subr.mxu0 %v150
    %182 = vmatpush1.msra.mxu0 %v149
    %183 = vmatprep.subr.mxu0 0.0
    %184 = vmatpush1.msra.mxu0 0.0
    %185 = vmatprep.subr.mxu0 0.0
    %186 = vmatpush1.msra.mxu0 0.0
    %187 = vmatprep.subr.mxu0 0.0
    %188 = vmatpush1.msra.mxu0 0.0
    %189 = vmatprep.subr.mxu0 0.0
    %190 = vmatpush1.msra.mxu0 0.0
    %191 = vmatprep.subr.mxu0 0.0
    %192 = vmatpush1.msra.mxu0 0.0
    %193 = vmatprep.subr.mxu0 0.0
    %194 = vmatpush1.msra.mxu0 0.0
    %195 = vmatprep.subr.mxu0 0.0
    %196 = vmatpush1.msra.mxu0 0.0
    %197 = vmatprep.subr.mxu0 0.0
    %198 = vmatpush1.msra.mxu0 0.0
    %199 = vmatprep.subr.mxu0 0.0
    %200 = vmatpush1.msra.mxu0 0.0
    %201 = vmatprep.subr.mxu0 0.0
    %202 = vmatpush1.msra.mxu0 0.0
    %203 = vmatprep.subr.mxu0 0.0
    %204 = vmatpush1.msra.mxu0 0.0
    %205 = vmatprep.subr.mxu0 0.0
    %206 = vmatpush1.msra.mxu0 0.0
    %207 = vmatprep.subr.mxu0 0.0
    %208 = vmatpush1.msra.mxu0 0.0
    %209 = vmatprep.subr.mxu0 0.0
    %210 = vmatpush1.msra.mxu0 0.0
    %211 = vmatprep.subr.mxu0 0.0
    %212 = vmatpush1.msra.mxu0 0.0
    %213 = vmatprep.subr.mxu0 0.0
    %214 = vmatpush1.msra.mxu0 0.0
    %215 = vmatprep.mubr.f32.mxu0 0.0
    %216 = vmatmul.mubr.f32.gmra.mrb[0].mxu0 %v109
    %v217 = vpop.f32.mrb[0].mxu0
    %v218 = vadd.f32 0.0, %v217
    %v219 = vpop.f32.mrb[0].mxu0
    %v220 = vadd.f32 0.0, %v219
    %221 = vmatprep.mubr.f32.mxu0 0.0
    %222 = vmatmul.mubr.f32.gmra.mrb[0].mxu0 %v110
    %v223 = vpop.f32.mrb[0].mxu0
    %v224 = vadd.f32 0.0, %v223
    %v225 = vpop.f32.mrb[0].mxu0
    %v226 = vadd.f32 0.0, %v225
    %227 = vdwg.mxu0
    %v228 = vld [vmem:[#allocation10] sm:$0xff]
    %v229 = vld [vmem:[#allocation10 + $0x8] sm:$0xff]
    %v230 = vld [vmem:[#allocation10 + $0x10] sm:$0xff]
    %v231 = vld [vmem:[#allocation10 + $0x18] sm:$0xff]
    %v232 = vld [vmem:[#allocation10 + $0x20] sm:$0xff]
    %v233 = vld [vmem:[#allocation10 + $0x28] sm:$0xff]
    %v234 = vld [vmem:[#allocation10 + $0x30] sm:$0xff]
    %v235 = vld [vmem:[#allocation10 + $0x38] sm:$0xff]
    %v236 = vld [vmem:[#allocation10 + $0x40] sm:$0xff]
    %v237 = vld [vmem:[#allocation10 + $0x48] sm:$0xff]
    %v238 = vld [vmem:[#allocation10 + $0x50] sm:$0xff]
    %v239 = vld [vmem:[#allocation10 + $0x58] sm:$0xff]
    %v240 = vld [vmem:[#allocation10 + $0x60] sm:$0xff]
    %v241 = vld [vmem:[#allocation10 + $0x68] sm:$0xff]
    %v242 = vld [vmem:[#allocation10 + $0x70] sm:$0xff]
    %v243 = vld [vmem:[#allocation10 + $0x78] sm:$0xff]
    %v244 = vld [vmem:[#allocation10 + $0x80] sm:$0xff]
    %v245 = vld [vmem:[#allocation10 + $0x88] sm:$0xff]
    %v246 = vld [vmem:[#allocation10 + $0x90] sm:$0xff]
    %v247 = vld [vmem:[#allocation10 + $0x98] sm:$0xff]
    %v248 = vld [vmem:[#allocation10 + $0xa0] sm:$0xff]
    %v249 = vld [vmem:[#allocation10 + $0xa8] sm:$0xff]
    %v250 = vld [vmem:[#allocation10 + $0xb0] sm:$0xff]
    %v251 = vld [vmem:[#allocation10 + $0xb8] sm:$0xff]
    %v252 = vld [vmem:[#allocation10 + $0xc0] sm:$0xff]
    %v253 = vld [vmem:[#allocation10 + $0xc8] sm:$0xff]
    %v254 = vld [vmem:[#allocation10 + $0xd0] sm:$0xff]
    %v255 = vld [vmem:[#allocation10 + $0xd8] sm:$0xff]
    %v256 = vld [vmem:[#allocation10 + $0xe0] sm:$0xff]
    %v257 = vld [vmem:[#allocation10 + $0xe8] sm:$0xff]
    %v258 = vld [vmem:[#allocation10 + $0xf0] sm:$0xff]
    %v259 = vld [vmem:[#allocation10 + $0xf8] sm:$0xff]
    %260 = vmatprep.subr.mxu0 %v229
    %261 = vmatpush1.msra.mxu0 %v228
    %262 = vmatprep.subr.mxu0 %v231
    %263 = vmatpush1.msra.mxu0 %v230
    %264 = vmatprep.subr.mxu0 %v233
    %265 = vmatpush1.msra.mxu0 %v232
    %266 = vmatprep.subr.mxu0 %v235
    %267 = vmatpush1.msra.mxu0 %v234
    %268 = vmatprep.subr.mxu0 %v237
    %269 = vmatpush1.msra.mxu0 %v236
    %270 = vmatprep.subr.mxu0 %v239
    %271 = vmatpush1.msra.mxu0 %v238
    %272 = vmatprep.subr.mxu0 %v241
    %273 = vmatpush1.msra.mxu0 %v240
    %274 = vmatprep.subr.mxu0 %v243
    %275 = vmatpush1.msra.mxu0 %v242
    %276 = vmatprep.subr.mxu0 %v245
    %277 = vmatpush1.msra.mxu0 %v244
    %278 = vmatprep.subr.mxu0 %v247
    %279 = vmatpush1.msra.mxu0 %v246
    %280 = vmatprep.subr.mxu0 %v249
    %281 = vmatpush1.msra.mxu0 %v248
    %282 = vmatprep.subr.mxu0 %v251
    %283 = vmatpush1.msra.mxu0 %v250
    %284 = vmatprep.subr.mxu0 %v253
    %285 = vmatpush1.msra.mxu0 %v252
    %286 = vmatprep.subr.mxu0 %v255
    %287 = vmatpush1.msra.mxu0 %v254
    %288 = vmatprep.subr.mxu0 %v257
    %289 = vmatpush1.msra.mxu0 %v256
    %290 = vmatprep.subr.mxu0 %v259
    %291 = vmatpush1.msra.mxu0 %v258
    %292 = vmatprep.subr.mxu0 0.0
    %293 = vmatpush1.msra.mxu0 0.0
    %294 = vmatprep.subr.mxu0 0.0
    %295 = vmatpush1.msra.mxu0 0.0
    %296 = vmatprep.subr.mxu0 0.0
    %297 = vmatpush1.msra.mxu0 0.0
    %298 = vmatprep.subr.mxu0 0.0
    %299 = vmatpush1.msra.mxu0 0.0
    %300 = vmatprep.subr.mxu0 0.0
    %301 = vmatpush1.msra.mxu0 0.0
    %302 = vmatprep.subr.mxu0 0.0
    %303 = vmatpush1.msra.mxu0 0.0
    %304 = vmatprep.subr.mxu0 0.0
    %305 = vmatpush1.msra.mxu0 0.0
    %306 = vmatprep.subr.mxu0 0.0
    %307 = vmatpush1.msra.mxu0 0.0
    %308 = vmatprep.subr.mxu0 0.0
    %309 = vmatpush1.msra.mxu0 0.0
    %310 = vmatprep.subr.mxu0 0.0
    %311 = vmatpush1.msra.mxu0 0.0
    %312 = vmatprep.subr.mxu0 0.0
    %313 = vmatpush1.msra.mxu0 0.0
    %314 = vmatprep.subr.mxu0 0.0
    %315 = vmatpush1.msra.mxu0 0.0
    %316 = vmatprep.subr.mxu0 0.0
    %317 = vmatpush1.msra.mxu0 0.0
    %318 = vmatprep.subr.mxu0 0.0
    %319 = vmatpush1.msra.mxu0 0.0
    %320 = vmatprep.subr.mxu0 0.0
    %321 = vmatpush1.msra.mxu0 0.0
    %322 = vmatprep.subr.mxu0 0.0
    %323 = vmatpush1.msra.mxu0 0.0
    %324 = vmatprep.mubr.f32.mxu0 0.0
    %325 = vmatmul.mubr.f32.gmra.mrb[0].mxu0 %v113
    %v326 = vpop.f32.mrb[0].mxu0
    %v327 = vadd.f32 0.0, %v326
    %v328 = vpop.f32.mrb[0].mxu0
    %v329 = vadd.f32 0.0, %v328
    %330 = vmatprep.mubr.f32.mxu0 0.0
    %331 = vmatmul.mubr.f32.gmra.mrb[0].mxu0 %v114
    %v332 = vpop.f32.mrb[0].mxu0
    %v333 = vadd.f32 0.0, %v332
    %v334 = vpop.f32.mrb[0].mxu0
    %v335 = vadd.f32 0.0, %v334
    %336 = vdwg.mxu0
    %v337 = vld [vmem:[#allocation11] sm:$0xff]
    %v338 = vld [vmem:[#allocation11 + $0x8] sm:$0xff]
    %v339 = vld [vmem:[#allocation11 + $0x10] sm:$0xff]
    %v340 = vld [vmem:[#allocation11 + $0x18] sm:$0xff]
    %v341 = vld [vmem:[#allocation11 + $0x20] sm:$0xff]
    %v342 = vld [vmem:[#allocation11 + $0x28] sm:$0xff]
    %v343 = vld [vmem:[#allocation11 + $0x30] sm:$0xff]
    %v344 = vld [vmem:[#allocation11 + $0x38] sm:$0xff]
    %v345 = vld [vmem:[#allocation11 + $0x40] sm:$0xff]
    %v346 = vld [vmem:[#allocation11 + $0x48] sm:$0xff]
    %v347 = vld [vmem:[#allocation11 + $0x50] sm:$0xff]
    %v348 = vld [vmem:[#allocation11 + $0x58] sm:$0xff]
    %v349 = vld [vmem:[#allocation11 + $0x60] sm:$0xff]
    %v350 = vld [vmem:[#allocation11 + $0x68] sm:$0xff]
    %v351 = vld [vmem:[#allocation11 + $0x70] sm:$0xff]
    %v352 = vld [vmem:[#allocation11 + $0x78] sm:$0xff]
    %v353 = vld [vmem:[#allocation11 + $0x80] sm:$0xff]
    %v354 = vld [vmem:[#allocation11 + $0x88] sm:$0xff]
    %v355 = vld [vmem:[#allocation11 + $0x90] sm:$0xff]
    %v356 = vld [vmem:[#allocation11 + $0x98] sm:$0xff]
    %v357 = vld [vmem:[#allocation11 + $0xa0] sm:$0xff]
    %v358 = vld [vmem:[#allocation11 + $0xa8] sm:$0xff]
    %v359 = vld [vmem:[#allocation11 + $0xb0] sm:$0xff]
    %v360 = vld [vmem:[#allocation11 + $0xb8] sm:$0xff]
    %v361 = vld [vmem:[#allocation11 + $0xc0] sm:$0xff]
    %v362 = vld [vmem:[#allocation11 + $0xc8] sm:$0xff]
    %v363 = vld [vmem:[#allocation11 + $0xd0] sm:$0xff]
    %v364 = vld [vmem:[#allocation11 + $0xd8] sm:$0xff]
    %v365 = vld [vmem:[#allocation11 + $0xe0] sm:$0xff]
    %v366 = vld [vmem:[#allocation11 + $0xe8] sm:$0xff]
    %v367 = vld [vmem:[#allocation11 + $0xf0] sm:$0xff]
    %v368 = vld [vmem:[#allocation11 + $0xf8] sm:$0xff]
    %369 = vmatprep.subr.mxu0 %v338
    %370 = vmatpush1.msra.mxu0 %v337
    %371 = vmatprep.subr.mxu0 %v340
    %372 = vmatpush1.msra.mxu0 %v339
    %373 = vmatprep.subr.mxu0 %v342
    %374 = vmatpush1.msra.mxu0 %v341
    %375 = vmatprep.subr.mxu0 %v344
    %376 = vmatpush1.msra.mxu0 %v343
    %377 = vmatprep.subr.mxu0 %v346
    %378 = vmatpush1.msra.mxu0 %v345
    %379 = vmatprep.subr.mxu0 %v348
    %380 = vmatpush1.msra.mxu0 %v347
    %381 = vmatprep.subr.mxu0 %v350
    %382 = vmatpush1.msra.mxu0 %v349
    %383 = vmatprep.subr.mxu0 %v352
    %384 = vmatpush1.msra.mxu0 %v351
    %385 = vmatprep.subr.mxu0 %v354
    %386 = vmatpush1.msra.mxu0 %v353
    %387 = vmatprep.subr.mxu0 %v356
    %388 = vmatpush1.msra.mxu0 %v355
    %389 = vmatprep.subr.mxu0 %v358
    %390 = vmatpush1.msra.mxu0 %v357
    %391 = vmatprep.subr.mxu0 %v360
    %392 = vmatpush1.msra.mxu0 %v359
    %393 = vmatprep.subr.mxu0 %v362
    %394 = vmatpush1.msra.mxu0 %v361
    %395 = vmatprep.subr.mxu0 %v364
    %396 = vmatpush1.msra.mxu0 %v363
    %397 = vmatprep.subr.mxu0 %v366
    %398 = vmatpush1.msra.mxu0 %v365
    %399 = vmatprep.subr.mxu0 %v368
    %400 = vmatpush1.msra.mxu0 %v367
    %401 = vmatprep.subr.mxu0 0.0
    %402 = vmatpush1.msra.mxu0 0.0
    %403 = vmatprep.subr.mxu0 0.0
    %404 = vmatpush1.msra.mxu0 0.0
    %405 = vmatprep.subr.mxu0 0.0
    %406 = vmatpush1.msra.mxu0 0.0
    %407 = vmatprep.subr.mxu0 0.0
    %408 = vmatpush1.msra.mxu0 0.0
    %409 = vmatprep.subr.mxu0 0.0
    %410 = vmatpush1.msra.mxu0 0.0
    %411 = vmatprep.subr.mxu0 0.0
    %412 = vmatpush1.msra.mxu0 0.0
    %413 = vmatprep.subr.mxu0 0.0
    %414 = vmatpush1.msra.mxu0 0.0
    %415 = vmatprep.subr.mxu0 0.0
    %416 = vmatpush1.msra.mxu0 0.0
    %417 = vmatprep.subr.mxu0 0.0
    %418 = vmatpush1.msra.mxu0 0.0
    %419 = vmatprep.subr.mxu0 0.0
    %420 = vmatpush1.msra.mxu0 0.0
    %421 = vmatprep.subr.mxu0 0.0
    %422 = vmatpush1.msra.mxu0 0.0
    %423 = vmatprep.subr.mxu0 0.0
    %424 = vmatpush1.msra.mxu0 0.0
    %425 = vmatprep.subr.mxu0 0.0
    %426 = vmatpush1.msra.mxu0 0.0
    %427 = vmatprep.subr.mxu0 0.0
    %428 = vmatpush1.msra.mxu0 0.0
    %429 = vmatprep.subr.mxu0 0.0
    %430 = vmatpush1.msra.mxu0 0.0
    %431 = vmatprep.subr.mxu0 0.0
    %432 = vmatpush1.msra.mxu0 0.0
    %433 = vmatprep.mubr.f32.mxu0 0.0
    %434 = vmatmul.mubr.f32.gmra.mrb[0].mxu0 %v117
    %v435 = vpop.f32.mrb[0].mxu0
    %v436 = vadd.f32 0.0, %v435
    %v437 = vpop.f32.mrb[0].mxu0
    %v438 = vadd.f32 0.0, %v437
    %439 = vmatprep.mubr.f32.mxu0 0.0
    %440 = vmatmul.mubr.f32.gmra.mrb[0].mxu0 %v118
    %v441 = vpop.f32.mrb[0].mxu0
    %v442 = vadd.f32 0.0, %v441
    %v443 = vpop.f32.mrb[0].mxu0
    %v444 = vadd.f32 0.0, %v443
    %445 = vdwg.mxu0
    %v446 = vld [vmem:[%s6] sm:$0x1]
    %v447 = vld [vmem:[%s6 + $0x1] sm:$0x1]
    %v448 = vld [vmem:[%s6 + $0x2] sm:$0x1]
    %v449 = vld [vmem:[%s6 + $0x3] sm:$0x1]
    %v450 = vld [vmem:[%s6 + $0x4] sm:$0x1]
    %v451 = vld [vmem:[%s6 + $0x5] sm:$0x1]
    %v452 = vadd.f32 %v218, %v327
    %v453 = vadd.f32 %v224, %v333
    %v454 = vlaneseq
    %v455 = vshrl.u32 %v454, 7
    %v456 = vsub.s32 0, %v455
    %v457 = vrot.slane %v446, %v456
    %v458 = vadd.f32 %v452, %v457
    %v459 = vadd.f32 %v453, %v457
    %v460 = vmax.f32 %v458, 0.0
    %v461 = vmax.f32 %v459, 0.0
    %v462 = vadd.f32 %v220, %v436
    %v463 = vadd.f32 %v226, %v442
    %v464 = vlaneseq
    %v465 = vshrl.u32 %v464, 7
    %v466 = vsub.s32 0, %v465
    %v467 = vrot.slane %v447, %v466
    %v468 = vadd.f32 %v462, %v467
    %v469 = vadd.f32 %v463, %v467
    %v470 = vmax.f32 %v468, 0.0
    %v471 = vmax.f32 %v469, 0.0
    %v472 = vlaneseq
    %v473 = vshrl.u32 %v472, 7
    %v474 = vsub.s32 0, %v473
    %v475 = vrot.slane %v448, %v474
    %v476 = vadd.f32 %v329, %v475
    %v477 = vadd.f32 %v335, %v475
    %v478 = vlaneseq
    %v479 = vshrl.u32 %v478, 7
    %v480 = vsub.s32 0, %v479
    %v481 = vrot.slane %v449, %v480
    %v482 = vadd.f32 %v438, %v481
    %v483 = vadd.f32 %v444, %v481
    %v484 = vmul.f32 %v460, %v476
    %v485 = vmul.f32 %v461, %v477
    %v486 = vmul.f32 %v470, %v482
    %v487 = vmul.f32 %v471, %v483
    %v488 = vadd.f32 %v484, %v486
    %v489 = vadd.f32 %v485, %v487
    %v490 = vmul.f32 %v109, %v109
    %v491 = vmul.f32 %v110, %v110
    %492 = vadd.xlane.f32.xlu0 %v490
    %v493 = vpop.xlane.xlu0 %492
    %494 = vadd.xlane.f32.xlu0 %v491
    %v495 = vpop.xlane.xlu0 %494
    %v496 = vrsqrt.pop %v493
    %v497 = vmul.f32 %v493, %v496
    %vm498 = vcmp.eq.f32.partialorder %v493, inf
    %v499 = vsel %vm498, %v493, %v497
    %vm500 = vcmp.eq.f32.partialorder %v493, 0.0
    %v501 = vand.u32 %v493, 2147483648
    %v502 = vsel %vm500, %v501, %v499
    %v503 = vrsqrt.pop %v495
    %v504 = vmul.f32 %v495, %v503
    %vm505 = vcmp.eq.f32.partialorder %v495, inf
    %v506 = vsel %vm505, %v495, %v504
    %vm507 = vcmp.eq.f32.partialorder %v495, 0.0
    %v508 = vand.u32 %v495, 2147483648
    %v509 = vsel %vm507, %v508, %v506
    %v510 = vmul.f32 %v488, %v488
    %v511 = vmul.f32 %v489, %v489
    %512 = vadd.xlane.f32.xlu0 %v510
    %v513 = vpop.xlane.xlu0 %512
    %514 = vadd.xlane.f32.xlu0 %v511
    %v515 = vpop.xlane.xlu0 %514
    %v516 = vrsqrt.pop %v513
    %v517 = vmul.f32 %v513, %v516
    %vm518 = vcmp.eq.f32.partialorder %v513, inf
    %v519 = vsel %vm518, %v513, %v517
    %vm520 = vcmp.eq.f32.partialorder %v513, 0.0
    %v521 = vand.u32 %v513, 2147483648
    %v522 = vsel %vm520, %v521, %v519
    %v523 = vrsqrt.pop %v515
    %v524 = vmul.f32 %v515, %v523
    %vm525 = vcmp.eq.f32.partialorder %v515, inf
    %v526 = vsel %vm525, %v515, %v524
    %vm527 = vcmp.eq.f32.partialorder %v515, 0.0
    %v528 = vand.u32 %v515, 2147483648
    %v529 = vsel %vm527, %v528, %v526
    %v530 = vadd.f32 %v522, 1e-06
    %v531 = vadd.f32 %v529, 1e-06
    %v532 = vrcp.pop %v530
    %v533 = vrcp.pop %v531
    %v534 = vmul.f32 %v502, %v532
    %v535 = vmul.f32 %v509, %v533
    %v536 = vmin.f32 %v534, 1.0
    %v537 = vmin.f32 %v535, 1.0
    %v538 = vmul.f32 %v536, %v488
    %v539 = vmul.f32 %v537, %v489
    %v540 = vadd.f32 %v109, %v538
    %v541 = vadd.f32 %v110, %v539
    %542 = vadd.xlane.f32.xlu0 %v540
    %v543 = vpop.xlane.xlu0 %542
    %544 = vadd.xlane.f32.xlu0 %v541
    %v545 = vpop.xlane.xlu0 %544
    %v546 = vmul.f32 %v543, 0.03125
    %v547 = vmul.f32 %v545, 0.03125
    %v548 = vmul.f32 %v540, %v540
    %v549 = vmul.f32 %v541, %v541
    %550 = vadd.xlane.f32.xlu0 %v548
    %v551 = vpop.xlane.xlu0 %550
    %552 = vadd.xlane.f32.xlu0 %v549
    %v553 = vpop.xlane.xlu0 %552
    %v554 = vmul.f32 %v551, 0.03125
    %v555 = vmul.f32 %v553, 0.03125
    %v556 = vmul.f32 %v546, %v546
    %v557 = vmul.f32 %v547, %v547
    %v558 = vsub.f32 %v554, %v556
    %v559 = vsub.f32 %v555, %v557
    %v560 = vsub.f32 %v540, %v546
    %v561 = vsub.f32 %v541, %v547
    %v562 = vadd.f32 %v558, 1e-05
    %v563 = vadd.f32 %v559, 1e-05
    %v564 = vrsqrt.pop %v562
    %v565 = vrsqrt.pop %v563
    %v566 = vmul.f32 %v560, %v564
    %v567 = vmul.f32 %v561, %v565
    %v568 = vlaneseq
    %v569 = vshrl.u32 %v568, 7
    %v570 = vsub.s32 0, %v569
    %v571 = vrot.slane %v450, %v570
    %v572 = vmul.f32 %v566, %v571
    %v573 = vmul.f32 %v567, %v571
    %v574 = vlaneseq
    %v575 = vshrl.u32 %v574, 7
    %v576 = vsub.s32 0, %v575
    %v577 = vrot.slane %v451, %v576
    %v578 = vadd.f32 %v572, %v577
    %v579 = vadd.f32 %v573, %v577
    %580 = vst [vmem:[#allocation13] sm:$0xff] %v578
    %581 = vst [vmem:[#allocation13 + $0x8] sm:$0xff] %v579
    // Predicated region
    $region54: #{tpu_custom_call.1} parent=1 // pred_check
      _
    $region55: #{tpu_custom_call.1} parent=1 // pred_check_branch
      %583 = sbr.rel (0) target = $region57
    $region56: #{tpu_custom_call.1} parent=1 // pred_region
      %s585 = ssub.s32 256, 256
      %586 = vsyncadd [#allocation4], %s585
      %s587 = sshll.u32 [#allocation13], 4
      %s588 = int_to_ptr.vmem [resolvable:$true] %s587
      %593 = dma.vmem_to_hbm [thread:$0]  %s588, 256, %s7, [#allocation4], 128, 128, 8
    $region57: #{tpu_custom_call.1} parent=1 // pred_fallthru
      _
    // Predicated region
    $region58: #{tpu_custom_call.1} parent=1 // pred_check
      _
    $region59: #{tpu_custom_call.1} parent=1 // pred_check_branch
      %595 = sbr.rel (0) target = $region61
    $region60: #{tpu_custom_call.1} parent=1 // pred_region
      %596 = dma.done [#allocation4], 256
    $region61: #{tpu_custom_call.1} parent=1 // pred_fallthru
      _
    %597 = vsyncpa [#allocation3], 1
    %598 = vsyncpa [#allocation6], 1
    %599 = vsyncpa [#allocation9], 1
    %600 = vsyncpa [#allocation12], 1
    %601 = vsyncpa [#allocation4], 1

</llo_original>
